<compile_context>
chip_gen: v7x
topology: tpu7x:2x2x1
jax: 0.10.0
libtpu: 0.0.40
codegen_flags: <defaults>
</compile_context>

<pallas_src>
import functools

import jax
import jax.numpy as jnp
import numpy as np
from jax.experimental import pallas as pl
from jax.experimental.pallas import tpu as pltpu

GA_DIM = 16      # 16-dimensional multivectors of G(3,0,1)
NUM_BASIS = 9    # 5 grade projections + 4 "multiply by e0" maps


# ----------------------------------------------------------------------------
# Equi-linear basis (deterministic, built in-script).
# Basis-blade ordering of the 16-dim multivector:
#   0:1   1:e0 2:e1 3:e2 4:e3
#   5:e01 6:e02 7:e03 8:e12 9:e13 10:e23
#   11:e012 12:e013 13:e023 14:e123
#   15:e0123
# The 9 Pin(3,0,1)-equivariant linear maps are the 5 grade projections plus the
# 4 maps that left-multiply the e0-free blades of each grade by e0.
# TODO(synk): exact blade ordering of Blade.getEquiLinBasis() is unknown; this
#             uses the standard (GATr-style) ordering above.
# ----------------------------------------------------------------------------
def get_equi_lin_basis() -> np.ndarray:
    basis = np.zeros((NUM_BASIS, GA_DIM, GA_DIM), dtype=np.float32)
    grade_idx = [[0], [1, 2, 3, 4], [5, 6, 7, 8, 9, 10], [11, 12, 13, 14], [15]]
    # 5 grade projections
    for b, idxs in enumerate(grade_idx):
        for j in idxs:
            basis[b, j, j] = 1.0
    # 4 e0-multiplication maps (all +1 signs, e0 prepended in canonical order)
    basis[5, 1, 0] = 1.0                                   # 1    -> e0
    for dst, src in zip((5, 6, 7), (2, 3, 4)):             # e_i  -> e0i
        basis[6, dst, src] = 1.0
    for dst, src in zip((11, 12, 13), (8, 9, 10)):         # e_ij -> e0ij
        basis[7, dst, src] = 1.0
    basis[8, 15, 14] = 1.0                                 # e123 -> e0123
    return basis


# ----------------------------------------------------------------------------
# Pallas kernel: tiled matmul  (tm, tk) @ (tk, tn) -> (tm, tn)  with f32 acc.
# ----------------------------------------------------------------------------
def _equilinear_matmul_kernel(x_ref, w_ref, o_ref, acc_ref):
    @pl.when(pl.program_id(2) == 0)
    def _():
        acc_ref[...] = jnp.zeros_like(acc_ref)

    acc_ref[...] += jnp.dot(
        x_ref[...], w_ref[...], preferred_element_type=jnp.float32
    )

    @pl.when(pl.program_id(2) == pl.num_programs(2) - 1)
    def _():
        o_ref[...] = acc_ref[...].astype(o_ref.dtype)


def _pick_k_tile(k: int, cap: int = 512) -> int:
    # K tile must divide K exactly (edge garbage on K would corrupt valid rows)
    # and be a multiple of 128 (lane axis of x2d) unless it equals K.
    if k % 128 == 0:
        for cand in (512, 384, 256, 128):
            if cand <= cap and k % cand == 0:
                return cand
    return k  # full K (always legal: equals the array dim)


def _pick_n_tile(n: int, cap: int = 512) -> int:
    # N tile must be a multiple of 128 (output lane-dense stores) or equal N.
    if n % 128 == 0:
        return min(cap, n)
    return n


@functools.partial(jax.jit, static_argnames=("tm",))
def _matmul_pallas(x2d: jax.Array, w2d: jax.Array, tm: int = 256) -> jax.Array:
    m, k = x2d.shape
    k2, n = w2d.shape
    assert k == k2

    # Pad M only to the next multiple of 8 (<=7 extra rows, negligible traffic);
    # the (possibly ragged) last tm-block is handled by Pallas masked writeback.
    m_pad = pl.cdiv(m, 8) * 8
    if m_pad != m:
        x2d = jnp.pad(x2d, ((0, m_pad - m), (0, 0)))

    tm_eff = min(tm, m_pad)            # multiple of 8 by construction
    tk = _pick_k_tile(k)
    tn = _pick_n_tile(n)

    grid = (pl.cdiv(m_pad, tm_eff), pl.cdiv(n, tn), pl.cdiv(k, tk))

    out = pl.pallas_call(
        _equilinear_matmul_kernel,
        out_shape=jax.ShapeDtypeStruct((m_pad, n), jnp.float32),
        grid_spec=pltpu.PrefetchScalarGridSpec(
            num_scalar_prefetch=0,
            grid=grid,
            in_specs=[
                pl.BlockSpec((tm_eff, tk), lambda i, j, kk: (i, kk)),
                pl.BlockSpec((tk, tn), lambda i, j, kk: (kk, j)),
            ],
            out_specs=pl.BlockSpec((tm_eff, tn), lambda i, j, kk: (i, j)),
            scratch_shapes=[pltpu.VMEM((tm_eff, tn), jnp.float32)],
        ),
        compiler_params=pltpu.CompilerParams(
            dimension_semantics=("parallel", "parallel", "arbitrary"),
            vmem_limit_bytes=32 * 1024 * 1024,
        ),
        cost_estimate=pl.CostEstimate(
            flops=2 * m_pad * k * n,
            transcendentals=0,
            bytes_accessed=2 * m_pad * k + 2 * k * n + 4 * m_pad * n,
        ),
    )(x2d, w2d)
    return out[:m]


# ----------------------------------------------------------------------------
# EquiLinearLayer forward
# ----------------------------------------------------------------------------
class EquiLinearLayer:
    def __init__(self, input_features: int, output_features: int, key: jax.Array):
        self.input_features = input_features
        self.output_features = output_features
        self.basis = jnp.asarray(get_equi_lin_basis())  # (9, 16, 16)

        # xavier_uniform_ on a (O, I, 9) tensor: fan_in = I*9, fan_out = O*9
        fan_in = input_features * NUM_BASIS
        fan_out = output_features * NUM_BASIS
        bound = float(np.sqrt(6.0 / (fan_in + fan_out)))
        self.weights = jax.random.uniform(
            key,
            (output_features, input_features, NUM_BASIS),
            dtype=jnp.float32,
            minval=-bound,
            maxval=bound,
        )

        # Merge weights with basis once (parameter setup, plain JAX):
        #   K[(i,g'), (o,g)] = sum_b W[o,i,b] * Basis[b,g,g']
        # Merge in f32, then cast to bf16 for the MXU-native matmul path.
        # TODO(synk): for very large input_features the 24/256 sparsity of each
        #             16x16 (g',g) block could be exploited (blade-batched matmul)
        #             for ~10x fewer MXU FLOPs; dense merge is kept here since the
        #             layer is HBM-bound for small/medium feature counts.
        merged = jnp.einsum("oib,bgh->ihog", self.weights, self.basis)
        self.w_merged = merged.reshape(
            input_features * GA_DIM, output_features * GA_DIM
        ).astype(jnp.bfloat16)

    def __call__(self, x: jax.Array) -> jax.Array:
        # x: (..., input_features, 16)
        assert x.shape[-1] == GA_DIM and x.shape[-2] == self.input_features
        lead = x.shape[:-2]
        x2d = x.reshape(-1, self.input_features * GA_DIM).astype(jnp.bfloat16)
        out2d = _matmul_pallas(x2d, self.w_merged)
        return out2d.reshape(*lead, self.output_features, GA_DIM)


if __name__ == "__main__":
    key = jax.random.PRNGKey(0)
    k_w, k_x = jax.random.split(key)

    batch, seq = 2, 8
    in_features, out_features = 4, 8

    layer = EquiLinearLayer(in_features, out_features, k_w)
    x = jax.random.normal(k_x, (batch, seq, in_features, GA_DIM), dtype=jnp.float32)

    out = layer(x)
    out = jax.block_until_ready(out)

    # Self-check against the direct f32 einsum reference ('oib,bgg,...ig->...og').
    # Tolerance relaxed vs the pure-f32 path because inputs are cast to bf16
    # (f32 accumulation on the MXU); the basis merge itself is exact (0/1 entries).
    ref = jnp.einsum("oib,bgh,...ih->...og", layer.weights, layer.basis, x)
    np.testing.assert_allclose(np.asarray(out), np.asarray(ref), rtol=2e-2, atol=2e-2)
    assert out.shape == (batch, seq, out_features, GA_DIM)

    print("KERNEL_OK")
</pallas_src>

<mosaic_0001>
module attributes {stable_mosaic.version = 11 : i64} {
  func.func @_equilinear_matmul_kernel(%arg0: i32, %arg1: i32, %arg2: i32, %arg3: memref<16x64xbf16, #tpu.memory_space<vmem>>, %arg4: memref<64x128xbf16, #tpu.memory_space<vmem>>, %arg5: memref<16x128xf32, #tpu.memory_space<vmem>>, %arg6: memref<16x128xf32, #tpu.memory_space<vmem>>) attributes {dimension_semantics = [#tpu.dimension_semantics<parallel>, #tpu.dimension_semantics<parallel>, #tpu.dimension_semantics<arbitrary>], iteration_bounds = array<i64: 1, 1, 1>, scalar_prefetch = 0 : i64, scratch_operands = 1 : i64, tpu.core_type = #tpu.core_type<tc>, window_params = [{transform_indices = @transform_0, window_bounds = array<i64: 16, 64>}, {transform_indices = @transform_1, window_bounds = array<i64: 64, 128>}, {transform_indices = @transform_2, window_bounds = array<i64: 16, 128>}]} {
    %c0_i32 = arith.constant 0 : i32
    %0 = arith.cmpi eq, %arg2, %c0_i32 : i32
    %1 = arith.extui %0 : i1 to i32
    %c0_i32_0 = arith.constant 0 : i32
    %2 = arith.cmpi ne, %1, %c0_i32_0 : i32
    scf.if %2 {
      %cst_10 = arith.constant 0.000000e+00 : f32
      %12 = vector.broadcast %cst_10 : f32 to vector<16x128xf32>
      %c0_11 = arith.constant 0 : index
      %c0_12 = arith.constant 0 : index
      %13 = vector.load %arg6[%c0_11, %c0_12] : memref<16x128xf32, #tpu.memory_space<vmem>>, vector<16x128xf32>
      tpu.vector_store %arg6[%c0_11, %c0_12], %12 {strides = array<i32>} : memref<16x128xf32, #tpu.memory_space<vmem>>, vector<16x128xf32>,
    } else {
    }
    %c0 = arith.constant 0 : index
    %c0_1 = arith.constant 0 : index
    %3 = vector.load %arg6[%c0, %c0_1] : memref<16x128xf32, #tpu.memory_space<vmem>>, vector<16x128xf32>
    %c0_2 = arith.constant 0 : index
    %c0_3 = arith.constant 0 : index
    %4 = vector.load %arg3[%c0_2, %c0_3] : memref<16x64xbf16, #tpu.memory_space<vmem>>, vector<16x64xbf16>
    %c0_4 = arith.constant 0 : index
    %c0_5 = arith.constant 0 : index
    %5 = vector.load %arg4[%c0_4, %c0_5] : memref<64x128xbf16, #tpu.memory_space<vmem>>, vector<64x128xbf16>
    %cst = arith.constant dense<0.000000e+00> : vector<16x128xf32>
    %6 = tpu.matmul %4, %5, %cst {dimension_numbers = #tpu.dot_dimension_numbers<[1], [0], [0], [1], [0, 0, 1, 1], [], []>} : vector<16x64xbf16>, vector<64x128xbf16>, vector<16x128xf32> -> vector<16x128xf32>
    %7 = arith.addf %3, %6 : vector<16x128xf32>
    %c0_6 = arith.constant 0 : index
    %c0_7 = arith.constant 0 : index
    %8 = vector.load %arg6[%c0_6, %c0_7] : memref<16x128xf32, #tpu.memory_space<vmem>>, vector<16x128xf32>
    tpu.vector_store %arg6[%c0_6, %c0_7], %7 {strides = array<i32>} : memref<16x128xf32, #tpu.memory_space<vmem>>, vector<16x128xf32>,
    %c0_i32_8 = arith.constant 0 : i32
    %9 = arith.cmpi eq, %arg2, %c0_i32_8 : i32
    %10 = arith.extui %9 : i1 to i32
    %c0_i32_9 = arith.constant 0 : i32
    %11 = arith.cmpi ne, %10, %c0_i32_9 : i32
    scf.if %11 {
      %c0_10 = arith.constant 0 : index
      %c0_11 = arith.constant 0 : index
      %12 = vector.load %arg6[%c0_10, %c0_11] : memref<16x128xf32, #tpu.memory_space<vmem>>, vector<16x128xf32>
      %c0_12 = arith.constant 0 : index
      %c0_13 = arith.constant 0 : index
      %13 = vector.load %arg5[%c0_12, %c0_13] : memref<16x128xf32, #tpu.memory_space<vmem>>, vector<16x128xf32>
      tpu.vector_store %arg5[%c0_12, %c0_13], %12 {strides = array<i32>} : memref<16x128xf32, #tpu.memory_space<vmem>>, vector<16x128xf32>,
    } else {
    }
    return
  }
  func.func @transform_0(%arg0: i32, %arg1: i32, %arg2: i32) -> (i32, i32) {
    %c0_i32 = arith.constant 0 : i32
    return %arg0, %arg2 : i32, i32
  }
  func.func @transform_1(%arg0: i32, %arg1: i32, %arg2: i32) -> (i32, i32) {
    %c0_i32 = arith.constant 0 : i32
    return %arg2, %arg1 : i32, i32
  }
  func.func @transform_2(%arg0: i32, %arg1: i32, %arg2: i32) -> (i32, i32) {
    %c0_i32 = arith.constant 0 : i32
    return %arg0, %arg1 : i32, i32
  }
}

</mosaic_0001>

<llo_original>
// kernel: _matmul_pallas.1
$region0: #{_matmul_pallas.1}
  #allocation0 [shape = 'u32[]', space=smem, size = 0x4, offset = 0x4, fixed_abs, tag = 'smem constant byte address 0x4 - core index']
  #allocation1 [shape = 'u32[144,128]{1,0:T(1,128)}', space=vmem, size = 0x12000, scoped, tag = 'internal scratch']
  #allocation2 [shape = 'f32[16,128]{1,0:T(8,128)}', space=vmem, size = 0x2000, scoped, tag = 'scratch operand']
  %s0 = inlined_call_operand.hbm [shape: bf16[16,64], index: 0, kind: input, shape index: {}]
  %s1 = inlined_call_operand.hbm [shape: bf16[64,128], index: 1, kind: input, shape index: {}]
  %s2 = inlined_call_operand.hbm [shape: f32[16,128], index: 2, kind: output, shape index: {}]
  %s3 = sld [smem:[#allocation0]]
  $region34: #{_matmul_pallas.1} parent=0
    _
  %s5 = ssub.s32 1, %s3
  %s6 = scalar_select 0, %s5, %s3
  $region1: #{_matmul_pallas.1} parent=0
    #allocation3 [shape = 'u8[4096]{0}', space=vmem, size = 0x1000, scoped, tag = 'input window, operand 0, single buffered']
    #allocation4 [shape = 's32[1]{0}', space=sflag, size = 0x4, scoped, tag = 'scoped memory for _matmul_pallas.1']
    #allocation5 [shape = 's32[1]{0}', space=sflag, size = 0x4, scoped, tag = 'scoped memory for _matmul_pallas.1']
    #allocation6 [shape = 'u8[16384]{0}', space=vmem, size = 0x4000, scoped, tag = 'input window, operand 1, single buffered']
    #allocation7 [shape = 's32[1]{0}', space=sflag, size = 0x4, scoped, tag = 'scoped memory for _matmul_pallas.1']
    #allocation8 [shape = 'u8[8192]{0}', space=vmem, size = 0x2000, scoped, tag = 'output window, operand 0, single buffered']
    %7 = vsyncpa [#allocation4], 0
    %8 = vsyncpa [#allocation7], 0
    %9 = vsyncpa [#allocation5], 0
    // Predicated region
    $region2: #{_matmul_pallas.1} parent=1 // pred_check
      _
    $region3: #{_matmul_pallas.1} parent=1 // pred_check_branch
      %11 = sbr.rel (0) target = $region5
    $region4: #{_matmul_pallas.1} parent=1 // pred_region
      %s13 = ssub.s32 128, 128
      %14 = vsyncadd [#allocation4], %s13
      %s15 = sshll.u32 [#allocation3], 4
      %s16 = int_to_ptr.vmem [resolvable:$true] %s15
      %21 = dma.hbm_to_vmem [thread:$0]  %s0, 128, %s16, [#allocation4], 64, 64, 4
    $region5: #{_matmul_pallas.1} parent=1 // pred_fallthru
      _
    // Predicated region
    $region6: #{_matmul_pallas.1} parent=1 // pred_check
      _
    $region7: #{_matmul_pallas.1} parent=1 // pred_check_branch
      %23 = sbr.rel (0) target = $region9
    $region8: #{_matmul_pallas.1} parent=1 // pred_region
      %s25 = ssub.s32 512, 512
      %26 = vsyncadd [#allocation7], %s25
      %s27 = sshll.u32 [#allocation6], 4
      %s28 = int_to_ptr.vmem [resolvable:$true] %s27
      %33 = dma.hbm_to_vmem [thread:$0]  %s1, 512, %s28, [#allocation7], 64, 64, 4
    $region9: #{_matmul_pallas.1} parent=1 // pred_fallthru
      _
    // Predicated region
    $region10: #{_matmul_pallas.1} parent=1 // pred_check
      _
    $region11: #{_matmul_pallas.1} parent=1 // pred_check_branch
      %35 = sbr.rel (0) target = $region13
    $region12: #{_matmul_pallas.1} parent=1 // pred_region
      %36 = dma.done [#allocation4], 128
    $region13: #{_matmul_pallas.1} parent=1 // pred_fallthru
      _
    // Predicated region
    $region14: #{_matmul_pallas.1} parent=1 // pred_check
      _
    $region15: #{_matmul_pallas.1} parent=1 // pred_check_branch
      %38 = sbr.rel (0) target = $region17
    $region16: #{_matmul_pallas.1} parent=1 // pred_region
      %39 = dma.done [#allocation7], 512
    $region17: #{_matmul_pallas.1} parent=1 // pred_fallthru
      _
    %p41 = scmp.eq.s32.totalorder 0, 0
    // Predicated region
    $region18: #{_matmul_pallas.1} parent=1 // pred_check
      %p42 = pneg %p41
    $region19: #{_matmul_pallas.1} parent=1 // pred_check_branch
      %44 = sbr.rel (%p42) target = $region21
    $region20: #{_matmul_pallas.1} parent=1 // pred_region
      %45 = vst [vmem:[#allocation2] sm:$0xff] 0.0
      %46 = vst [vmem:[#allocation2 + $0x8] sm:$0xff] 0.0
    $region21: #{_matmul_pallas.1} parent=1 // pred_fallthru
      _
    %v47 = vld [vmem:[#allocation2] sm:$0xff]
    %v48 = vld [vmem:[#allocation2 + $0x8] sm:$0xff]
    %v49 = vld [vmem:[#allocation3] sm:$0xf]
    %v50 = vld [vmem:[#allocation3 + $0x4] sm:$0xf]
    %v51 = vld [vmem:[#allocation6] sm:$0xf]
    %v52 = vld [vmem:[#allocation6 + $0x4] sm:$0xf]
    %v53 = vld [vmem:[#allocation6 + $0x8] sm:$0xf]
    %v54 = vld [vmem:[#allocation6 + $0xc] sm:$0xf]
    %v55 = vld [vmem:[#allocation6 + $0x10] sm:$0xf]
    %v56 = vld [vmem:[#allocation6 + $0x14] sm:$0xf]
    %v57 = vld [vmem:[#allocation6 + $0x18] sm:$0xf]
    %v58 = vld [vmem:[#allocation6 + $0x1c] sm:$0xf]
    %v61 = vunpack.c.l.b16 %v49
    %v62 = vunpack.c.l.b16 %v50
    %v63 = vpack.c.b16 %v62, %v61
    %v72 = vunpack.c.l.b16 %v51
    %v73 = vunpack.c.l.b16 %v52
    %v74 = vunpack.c.l.b16 %v53
    %v75 = vunpack.c.l.b16 %v54
    %v76 = vunpack.c.l.b16 %v55
    %v77 = vunpack.c.l.b16 %v56
    %v78 = vunpack.c.l.b16 %v57
    %v79 = vunpack.c.l.b16 %v58
    %v80 = vpack.c.b16 %v73, %v72
    %v81 = vpack.c.b16 %v75, %v74
    %v82 = vpack.c.b16 %v77, %v76
    %v83 = vpack.c.b16 %v79, %v78
    %vm88 = vcmask 523264
    %v90 = vsel %vm88, %v63, 0
    %92 = vmatprep.subr.bf16.mxu0 0
    %93 = vmatpush1.bf16.msra.mxu0 %v80
    %94 = vmatprep.subr.bf16.mxu0 0
    %95 = vmatpush1.bf16.msra.mxu0 %v81
    %96 = vmatprep.subr.bf16.mxu0 0
    %97 = vmatpush1.bf16.msra.mxu0 %v82
    %98 = vmatprep.subr.bf16.mxu0 0
    %99 = vmatpush1.bf16.msra.mxu0 %v83
    %100 = vmatprep.subr.bf16.mxu0 0
    %101 = vmatpush1.bf16.msra.mxu0 0
    %102 = vmatprep.subr.bf16.mxu0 0
    %103 = vmatpush1.bf16.msra.mxu0 0
    %104 = vmatprep.subr.bf16.mxu0 0
    %105 = vmatpush1.bf16.msra.mxu0 0
    %106 = vmatprep.subr.bf16.mxu0 0
    %107 = vmatpush1.bf16.msra.mxu0 0
    %108 = vmatprep.subr.bf16.mxu0 0
    %109 = vmatpush1.bf16.msra.mxu0 0
    %110 = vmatprep.subr.bf16.mxu0 0
    %111 = vmatpush1.bf16.msra.mxu0 0
    %112 = vmatprep.subr.bf16.mxu0 0
    %113 = vmatpush1.bf16.msra.mxu0 0
    %114 = vmatprep.subr.bf16.mxu0 0
    %115 = vmatpush1.bf16.msra.mxu0 0
    %116 = vmatprep.subr.bf16.mxu0 0
    %117 = vmatpush1.bf16.msra.mxu0 0
    %118 = vmatprep.subr.bf16.mxu0 0
    %119 = vmatpush1.bf16.msra.mxu0 0
    %120 = vmatprep.subr.bf16.mxu0 0
    %121 = vmatpush1.bf16.msra.mxu0 0
    %122 = vmatprep.subr.bf16.mxu0 0
    %123 = vmatpush1.bf16.msra.mxu0 0
    %124 = vmatprep.mubr.bf16.mxu0 0
    %125 = vmatmul.mubr.bf16.gmra.mrb[0].mxu0 %v90
    %v126 = vpop.f32.mrb[0].mxu0
    %v127 = vadd.f32 0.0, %v126
    %v128 = vpop.f32.mrb[0].mxu0
    %v129 = vpop.f32.mrb[0].mxu0
    %v130 = vadd.f32 0.0, %v129
    %v131 = vpop.f32.mrb[0].mxu0
    %132 = vdwg.mxu0
    %v133 = vadd.f32 %v47, %v127
    %v134 = vadd.f32 %v48, %v130
    %135 = vst [vmem:[#allocation2] sm:$0xff] %v133
    %136 = vst [vmem:[#allocation2 + $0x8] sm:$0xff] %v134
    // Predicated region
    $region22: #{_matmul_pallas.1} parent=1 // pred_check
      %p137 = pneg %p41
    $region23: #{_matmul_pallas.1} parent=1 // pred_check_branch
      %139 = sbr.rel (%p137) target = $region25
    $region24: #{_matmul_pallas.1} parent=1 // pred_region
      %v140 = vld [vmem:[#allocation2] sm:$0xff]
      %v141 = vld [vmem:[#allocation2 + $0x8] sm:$0xff]
      %142 = vst [vmem:[#allocation8] sm:$0xff] %v140
      %143 = vst [vmem:[#allocation8 + $0x8] sm:$0xff] %v141
    $region25: #{_matmul_pallas.1} parent=1 // pred_fallthru
      _
    // Predicated region
    $region26: #{_matmul_pallas.1} parent=1 // pred_check
      _
    $region27: #{_matmul_pallas.1} parent=1 // pred_check_branch
      %145 = sbr.rel (0) target = $region29
    $region28: #{_matmul_pallas.1} parent=1 // pred_region
      %s147 = ssub.s32 256, 256
      %148 = vsyncadd [#allocation5], %s147
      %s149 = sshll.u32 [#allocation8], 4
      %s150 = int_to_ptr.vmem [resolvable:$true] %s149
      %155 = dma.vmem_to_hbm [thread:$0]  %s150, 256, %s2, [#allocation5], 128, 128, 8
    $region29: #{_matmul_pallas.1} parent=1 // pred_fallthru
      _
    // Predicated region
    $region30: #{_matmul_pallas.1} parent=1 // pred_check
      _
    $region31: #{_matmul_pallas.1} parent=1 // pred_check_branch
      %157 = sbr.rel (0) target = $region33
    $region32: #{_matmul_pallas.1} parent=1 // pred_region
      %158 = dma.done [#allocation5], 256
    $region33: #{_matmul_pallas.1} parent=1 // pred_fallthru
      _
    %159 = vsyncpa [#allocation4], 1
    %160 = vsyncpa [#allocation7], 1
    %161 = vsyncpa [#allocation5], 1

</llo_original>
